<compile_context>
chip_gen: v5e
topology: v5e:2x2
jax: 0.10.0
libtpu: 0.0.40
codegen_flags: <defaults>
</compile_context>

<pallas_src>
import functools

import jax
import jax.numpy as jnp
from jax.experimental import pallas as pl
from jax.experimental.pallas import tpu as pltpu

_LANES = 128
_SUBLANES = 8
_PAD_LOGIT = -1e4  # max(x,0)=0, x*t=0, log1p(exp(-1e4))=0  -> zero contribution


def _bce_partial_kernel(x_ref, t_ref, p_ref):
    """Partial BCE-with-logits sum for one (block_rows, 128) tile -> (8, 128)."""
    x = x_ref[...].astype(jnp.float32)
    t = t_ref[...].astype(jnp.float32)
    # Numerically-stable BCE-with-logits (same formulation as PyTorch):
    #   max(x, 0) - x * t + log1p(exp(-|x|))
    loss = jnp.maximum(x, 0.0) - x * t + jnp.log1p(jnp.exp(-jnp.abs(x)))
    # (block_rows, 128) -> (block_rows//8, 8, 128) is a pure vreg re-labeling;
    # summing over axis 0 is plain VPU vadds (no XLU cross-lane reduce here).
    p_ref[...] = jnp.sum(loss.reshape(-1, _SUBLANES, _LANES), axis=0)


def _round_up(x, m):
    return ((x + m - 1) // m) * m


@functools.partial(jax.jit, static_argnames=("block_rows",))
def classification_mean_task_loss(inputs, target, sample_weight=None, *,
                                  block_rows=4096):
    """Pallas implementation of ClassificationMeanTaskLoss.forward.

    inputs, target: (N, T) float arrays (logits and {0,1} targets), f32 or bf16.
    sample_weight is accepted but ignored (matching the PyTorch forward).
    Returns a scalar float32 mean BCE-with-logits loss.
    """
    del sample_weight  # unused by the reference forward pass
    n, t = inputs.shape
    total = n * t

    # Lane-dense layout: view the N*T elements as (m, 128) rows.
    m_raw = _round_up(pl.cdiv(total, _LANES), _SUBLANES)
    br = _round_up(min(block_rows, m_raw), _SUBLANES)   # rows per block
    m = _round_up(m_raw, br)
    grid_size = m // br
    pad = m * _LANES - total

    x_flat = jnp.pad(inputs.reshape(-1), (0, pad),
                     constant_values=_PAD_LOGIT).reshape(m, _LANES)
    t_flat = jnp.pad(target.reshape(-1), (0, pad),
                     constant_values=0.0).reshape(m, _LANES)

    partials = pl.pallas_call(
        _bce_partial_kernel,
        out_shape=jax.ShapeDtypeStruct((grid_size * _SUBLANES, _LANES),
                                       jnp.float32),
        grid=(grid_size,),
        in_specs=[
            pl.BlockSpec((br, _LANES), lambda i: (i, 0)),
            pl.BlockSpec((br, _LANES), lambda i: (i, 0)),
        ],
        out_specs=pl.BlockSpec((_SUBLANES, _LANES), lambda i: (i, 0)),
        compiler_params=pltpu.CompilerParams(
            dimension_semantics=("parallel",)),
    )(x_flat, t_flat)

    # Tiny epilogue: single cross-lane reduce of the per-block partials,
    # then the mean over the ORIGINAL (un-padded) element count.
    return jnp.sum(partials) / jnp.float32(total)


if __name__ == "__main__":
    key = jax.random.PRNGKey(0)
    k_in, k_tg = jax.random.split(key)

    num_tasks = 8
    batch = 16

    # __init__ parity only: log_vars is never read in forward().
    log_vars = jnp.zeros((num_tasks,), dtype=jnp.float32)

    logits = jax.random.normal(k_in, (batch, num_tasks), dtype=jnp.float32)
    target = (jax.random.uniform(k_tg, (batch, num_tasks)) > 0.5).astype(jnp.float32)
    sample_weight = jnp.ones((batch, num_tasks), dtype=jnp.float32)  # ignored

    loss = classification_mean_task_loss(logits, target, sample_weight)
    loss = jax.block_until_ready(loss)

    # Reference check against plain-JAX BCEWithLogitsLoss(mean).
    ref = jnp.mean(jnp.maximum(logits, 0.0) - logits * target
                   + jnp.log1p(jnp.exp(-jnp.abs(logits))))
    assert jnp.allclose(loss, ref, atol=1e-5, rtol=1e-5), (loss, ref)

    # Ragged-shape sanity check (N*T not a multiple of 128): exercises padding.
    k2_in, k2_tg = jax.random.split(jax.random.PRNGKey(1))
    lg2 = jax.random.normal(k2_in, (50, 7), dtype=jnp.float32)
    tg2 = (jax.random.uniform(k2_tg, (50, 7)) > 0.5).astype(jnp.float32)
    loss2 = jax.block_until_ready(classification_mean_task_loss(lg2, tg2))
    ref2 = jnp.mean(jnp.maximum(lg2, 0.0) - lg2 * tg2
                    + jnp.log1p(jnp.exp(-jnp.abs(lg2))))
    assert jnp.allclose(loss2, ref2, atol=1e-5, rtol=1e-5), (loss2, ref2)

    print("KERNEL_OK")
</pallas_src>

<mosaic_0001>
module attributes {stable_mosaic.version = 11 : i64} {
  func.func @_bce_partial_kernel(%arg0: i32, %arg1: memref<8x128xf32, #tpu.memory_space<vmem>>, %arg2: memref<8x128xf32, #tpu.memory_space<vmem>>, %arg3: memref<8x128xf32, #tpu.memory_space<vmem>>) attributes {dimension_semantics = [#tpu.dimension_semantics<parallel>], iteration_bounds = array<i64: 1>, scalar_prefetch = 0 : i64, scratch_operands = 0 : i64, tpu.core_type = #tpu.core_type<tc>, window_params = [{transform_indices = @transform_0, window_bounds = array<i64: 8, 128>}, {transform_indices = @transform_1, window_bounds = array<i64: 8, 128>}, {transform_indices = @transform_2, window_bounds = array<i64: 8, 128>}]} {
    %c0 = arith.constant 0 : index
    %c0_0 = arith.constant 0 : index
    %0 = vector.load %arg1[%c0, %c0_0] : memref<8x128xf32, #tpu.memory_space<vmem>>, vector<8x128xf32>
    %c0_1 = arith.constant 0 : index
    %c0_2 = arith.constant 0 : index
    %1 = vector.load %arg2[%c0_1, %c0_2] : memref<8x128xf32, #tpu.memory_space<vmem>>, vector<8x128xf32>
    %cst = arith.constant 0.000000e+00 : f32
    %2 = vector.broadcast %cst : f32 to vector<8x128xf32>
    %3 = arith.maximumf %0, %2 : vector<8x128xf32>
    %4 = arith.mulf %0, %1 : vector<8x128xf32>
    %5 = arith.subf %3, %4 : vector<8x128xf32>
    %6 = math.absf %0 : vector<8x128xf32>
    %cst_3 = arith.constant 0.000000e+00 : f32
    %7 = vector.broadcast %cst_3 : f32 to vector<8x128xf32>
    %8 = arith.subf %7, %6 : vector<8x128xf32>
    %9 = math.exp %8 : vector<8x128xf32>
    %10 = math.log1p %9 : vector<8x128xf32>
    %11 = arith.addf %5, %10 : vector<8x128xf32>
    %12 = vector.shape_cast %11 : vector<8x128xf32> to vector<1x8x128xf32>
    %cst_4 = arith.constant dense<0.000000e+00> : vector<8x128xf32>
    %13 = vector.multi_reduction <add>, %12, %cst_4 [0] : vector<1x8x128xf32> to vector<8x128xf32>
    %c0_5 = arith.constant 0 : index
    %c0_6 = arith.constant 0 : index
    %14 = vector.load %arg3[%c0_5, %c0_6] : memref<8x128xf32, #tpu.memory_space<vmem>>, vector<8x128xf32>
    tpu.vector_store %arg3[%c0_5, %c0_6], %13 {strides = array<i32>} : memref<8x128xf32, #tpu.memory_space<vmem>>, vector<8x128xf32>,
    return
  }
  func.func @transform_0(%arg0: i32) -> (i32, i32) {
    %c0_i32 = arith.constant 0 : i32
    %c0_i32_0 = arith.constant 0 : i32
    return %arg0, %c0_i32 : i32, i32
  }
  func.func @transform_1(%arg0: i32) -> (i32, i32) {
    %c0_i32 = arith.constant 0 : i32
    %c0_i32_0 = arith.constant 0 : i32
    return %arg0, %c0_i32 : i32, i32
  }
  func.func @transform_2(%arg0: i32) -> (i32, i32) {
    %c0_i32 = arith.constant 0 : i32
    %c0_i32_0 = arith.constant 0 : i32
    return %arg0, %c0_i32 : i32, i32
  }
}

</mosaic_0001>

<llo_original>
// kernel: classification_mean_task_loss.1
$region0: #{classification_mean_task_loss.1}
  #allocation0 [shape = 'u32[]', space=smem, size = 0x4, offset = 0x4, fixed_abs, tag = 'smem constant byte address 0x4 - core index']
  #allocation1 [shape = 'u32[72,128]{1,0:T(1,128)}', space=vmem, size = 0x9000, scoped, tag = 'internal scratch']
  %s0 = inlined_call_operand.vmem [shape: f32[8,128], index: 0, kind: input, shape index: {}]
  %s1 = inlined_call_operand.vmem [shape: f32[8,128], index: 1, kind: input, shape index: {}]
  %s2 = inlined_call_operand.vmem [shape: f32[8,128], index: 2, kind: output, shape index: {}]
  %s3 = sld [smem:[#allocation0]]
  $region18: #{classification_mean_task_loss.1} parent=0
    _
  %s5 = ssub.s32 1, %s3
  %s6 = scalar_select 0, %s5, %s3
  // Predicated region
  $region2: #{classification_mean_task_loss.1} parent=0 // pred_check
    _
  $region3: #{classification_mean_task_loss.1} parent=0 // pred_check_branch
    %8 = sbr.rel (0) target = $region5
  $region4: #{classification_mean_task_loss.1} parent=0 // pred_region
    _
  $region5: #{classification_mean_task_loss.1} parent=0 // pred_fallthru
    _
  // Predicated region
  $region6: #{classification_mean_task_loss.1} parent=0 // pred_check
    _
  $region7: #{classification_mean_task_loss.1} parent=0 // pred_check_branch
    %10 = sbr.rel (0) target = $region9
  $region8: #{classification_mean_task_loss.1} parent=0 // pred_region
    _
  $region9: #{classification_mean_task_loss.1} parent=0 // pred_fallthru
    _
  %v11 = vld [vmem:[%s0] sm:$0xff]
  %v12 = vld [vmem:[%s1] sm:$0xff]
  %v13 = vmax.f32 %v11, 0.0
  %v14 = vmul.f32 %v11, %v12
  %v15 = vsub.f32 %v13, %v14
  %v16 = vand.u32 2147483647, %v11
  %v17 = vsub.f32 0.0, %v16
  %v18 = vmul.f32 %v17, 1.442695
  %v19 = vpow.pop %v18
  %v20 = vadd.f32 %v19, 1.0
  %v21 = vlog2.pop %v20
  %v22 = vmul.f32 %v21, 0.6931472
  %v23 = vmul.f32 -0.5, %v19
  %v24 = vadd.f32 %v23, 1.0
  %v25 = vmul.f32 %v24, %v19
  %v26 = vand.u32 2147483647, %v19
  %vm27 = vcmp.lt.f32.partialorder %v26, 0.0004427343
  %v28 = vsel %vm27, %v25, %v22
  %v29 = vadd.f32 %v15, %v28
  %v30 = vadd.f32 %v29, 0.0
  %31 = vst [vmem:[%s2] sm:$0xff] %v30
  // Predicated region
  $region10: #{classification_mean_task_loss.1} parent=0 // pred_check
    _
  $region11: #{classification_mean_task_loss.1} parent=0 // pred_check_branch
    %33 = sbr.rel (0) target = $region13
  $region12: #{classification_mean_task_loss.1} parent=0 // pred_region
    _
  $region13: #{classification_mean_task_loss.1} parent=0 // pred_fallthru
    _
  // Predicated region
  $region14: #{classification_mean_task_loss.1} parent=0 // pred_check
    _
  $region15: #{classification_mean_task_loss.1} parent=0 // pred_check_branch
    %35 = sbr.rel (0) target = $region17
  $region16: #{classification_mean_task_loss.1} parent=0 // pred_region
    _
  $region17: #{classification_mean_task_loss.1} parent=0 // pred_fallthru
    _

</llo_original>
